<compile_context>
chip_gen: v6e
topology: v6e:2x2x1
jax: 0.10.0
libtpu: 0.0.40
codegen_flags: <defaults>
</compile_context>

<pallas_src>
import numpy as np
import jax
import jax.numpy as jnp
from jax.experimental import pallas as pl
from jax.experimental.pallas import tpu as pltpu


# ----------------------------------------------------------------------------
# host helpers
# ----------------------------------------------------------------------------
def _bilinear_matrix_align_corners(in_size: int, out_size: int) -> np.ndarray:
    """M s.t. M @ v == 1-D bilinear resize with align_corners=True (PyTorch)."""
    m = np.zeros((out_size, in_size), dtype=np.float32)
    if out_size == 1 or in_size == 1:
        m[:, 0] = 1.0
        return m
    scale = (in_size - 1) / (out_size - 1)
    for d in range(out_size):
        src = scale * d
        i0 = min(int(np.floor(src)), in_size - 1)
        frac = src - i0
        i1 = min(i0 + 1, in_size - 1)
        m[d, i0] += 1.0 - frac
        m[d, i1] += frac
    return m


def _fold_bn(w, b, gamma, beta, mean, var, eps=1e-5):
    """Fold eval-mode BatchNorm into conv weight / bias."""
    s = gamma / jnp.sqrt(var + eps)
    return w * s[:, None, None, None], (b - mean) * s + beta


# ----------------------------------------------------------------------------
# kernel 1: bilinear x2 upsample (align_corners=True) of x1 + concat with x2
# ----------------------------------------------------------------------------
def _make_up_cat_kernel(c1, c2):
    def kernel(x1_ref, x2_ref, uh_ref, uwt_ref, o_ref):
        # torch.cat([x2, up(x1)], dim=1): skip-connection channels go first.
        o_ref[0, 0:c2] = x2_ref[0]
        uh = uh_ref[...]          # (Hs, H)
        uwt = uwt_ref[...]        # (W, Ws)
        # per-channel resize as two small matmuls (c1 is tiny; unrolled).
        for c in range(c1):
            t = jnp.dot(uh, x1_ref[0, c], preferred_element_type=jnp.float32)
            o_ref[0, c2 + c] = jnp.dot(t, uwt, preferred_element_type=jnp.float32)
    return kernel


# ----------------------------------------------------------------------------
# kernel 2: conv3x3 (pad=1) + folded BN + Mish, on flattened padded layout.
#   input : (1, Cin, L+2)  where L = (Hs+2)*(Ws+2), with zero pads/guards
#   output: (1, Cout, Lc)  where Lc = Hs*(Ws+2); pad columns are zeroed (mask)
# ----------------------------------------------------------------------------
def _make_conv_bn_mish_kernel(hs, ws):
    wp = ws + 2
    lc = hs * wp

    def kernel(x_ref, w_ref, b_ref, mask_ref, o_ref):
        acc = None
        for kh in range(3):
            for kw in range(3):
                s = kh * wp + kw
                tap = x_ref[0, :, s:s + lc]                    # (Cin, Lc) shifted view
                p = jnp.dot(w_ref[kh * 3 + kw], tap,
                            preferred_element_type=jnp.float32)
                acc = p if acc is None else acc + p
        z = acc + b_ref[...]                                   # (Cout, Lc) + (Cout, 1)
        # Mish: z * tanh(softplus(z)), numerically stable softplus.
        sp = jnp.maximum(z, 0.0) + jnp.log(1.0 + jnp.exp(-jnp.abs(z)))
        o_ref[0] = (z * jnp.tanh(sp)) * mask_ref[...]          # zero the pad columns
    return kernel


# ----------------------------------------------------------------------------
# wrapper
# ----------------------------------------------------------------------------
def up_forward(x1, x2, params):
    N, C1, H, W = x1.shape
    _, C2, Hs, Ws = x2.shape
    assert Hs == 2 * H and Ws == 2 * W, "upsampled x1 must match x2 spatially"
    Cin = C1 + C2
    Hp, Wp = Hs + 2, Ws + 2
    L = Hp * Wp
    Lc = Hs * Wp

    Uh = jnp.asarray(_bilinear_matrix_align_corners(H, Hs))       # (Hs, H)
    UwT = jnp.asarray(_bilinear_matrix_align_corners(W, Ws).T)    # (W, Ws)

    cparams = pltpu.CompilerParams(dimension_semantics=("parallel",),
                                   vmem_limit_bytes=32 * 1024 * 1024)

    # --- upsample + concat -> (N, Cin, Hs, Ws) ---
    xcat = pl.pallas_call(
        _make_up_cat_kernel(C1, C2),
        out_shape=jax.ShapeDtypeStruct((N, Cin, Hs, Ws), jnp.float32),
        grid=(N,),
        in_specs=[
            pl.BlockSpec((1, C1, H, W), lambda n: (n, 0, 0, 0)),
            pl.BlockSpec((1, C2, Hs, Ws), lambda n: (n, 0, 0, 0)),
            pl.BlockSpec((Hs, H), lambda n: (0, 0)),
            pl.BlockSpec((W, Ws), lambda n: (0, 0)),
        ],
        out_specs=pl.BlockSpec((1, Cin, Hs, Ws), lambda n: (n, 0, 0, 0)),
        compiler_params=cparams,
    )(x1, x2, Uh, UwT)

    # --- fold eval-mode BN into the two convs ---
    Cmid = params['conv1_w'].shape[0]
    Cout = params['conv2_w'].shape[0]
    wf1, bf1 = _fold_bn(params['conv1_w'], params['conv1_b'],
                        params['bn1_gamma'], params['bn1_beta'],
                        params['bn1_mean'], params['bn1_var'])
    wf2, bf2 = _fold_bn(params['conv2_w'], params['conv2_b'],
                        params['bn2_gamma'], params['bn2_beta'],
                        params['bn2_mean'], params['bn2_var'])
    w1t = wf1.transpose(2, 3, 0, 1).reshape(9, Cmid, Cin)   # tap k = kh*3 + kw
    w2t = wf2.transpose(2, 3, 0, 1).reshape(9, Cout, Cmid)
    b1 = bf1.reshape(Cmid, 1)
    b2 = bf2.reshape(Cout, 1)

    # mask of valid (non-pad) columns in the flattened (Hs, Wp) output layout
    mask_np = np.zeros((Hs, Wp), dtype=np.float32)
    mask_np[:, 1:Ws + 1] = 1.0
    mask = jnp.asarray(mask_np.reshape(1, Lc))

    conv_kernel = _make_conv_bn_mish_kernel(Hs, Ws)

    def conv_call(xe_in, wt, b, cin, cout):
        return pl.pallas_call(
            conv_kernel,
            out_shape=jax.ShapeDtypeStruct((N, cout, Lc), jnp.float32),
            grid=(N,),
            in_specs=[
                pl.BlockSpec((1, cin, L + 2), lambda n: (n, 0, 0)),
                pl.BlockSpec((9, cout, cin), lambda n: (0, 0, 0)),
                pl.BlockSpec((cout, 1), lambda n: (0, 0)),
                pl.BlockSpec((1, Lc), lambda n: (0, 0)),
            ],
            out_specs=pl.BlockSpec((1, cout, Lc), lambda n: (n, 0, 0)),
            compiler_params=cparams,
        )(xe_in, wt, b, mask)

    def to_flat_padded(t):
        # (N, C, Hs, Ws) -> zero-pad spatially -> flatten -> add 1-elem guards
        tp = jnp.pad(t, ((0, 0), (0, 0), (1, 1), (1, 1)))
        return jnp.pad(tp.reshape(t.shape[0], t.shape[1], L), ((0, 0), (0, 0), (1, 1)))

    # conv1 + BN1 + Mish
    xe1 = to_flat_padded(xcat)                                   # (N, Cin, L+2)
    h1 = conv_call(xe1, w1t, b1, Cin, Cmid)                      # (N, Cmid, Lc)

    # re-pad the intermediate (rows + guards; pad columns already zeroed in-kernel)
    h1p = h1.reshape(N, Cmid, Hs, Wp)
    h1e = jnp.pad(jnp.pad(h1p, ((0, 0), (0, 0), (1, 1), (0, 0))).reshape(N, Cmid, L),
                  ((0, 0), (0, 0), (1, 1)))                      # (N, Cmid, L+2)

    # conv2 + BN2 + Mish
    y2 = conv_call(h1e, w2t, b2, Cmid, Cout)                     # (N, Cout, Lc)
    return y2.reshape(N, Cout, Hs, Wp)[:, :, :, 1:Ws + 1]        # (N, Cout, Hs, Ws)


# ----------------------------------------------------------------------------
# pure-JAX reference (XLA conv) for a correctness sanity check
# ----------------------------------------------------------------------------
def _reference(x1, x2, params, Uh, UwT):
    up = jnp.einsum('hH,ncHw->nchw', Uh, x1)
    up = jnp.einsum('nchw,wW->nchW', up, UwT)
    x = jnp.concatenate([x2, up], axis=1)

    def conv_bn_mish(x, w, b, g, bt, mu, var):
        y = jax.lax.conv_general_dilated(
            x, w, window_strides=(1, 1), padding=((1, 1), (1, 1)),
            dimension_numbers=('NCHW', 'OIHW', 'NCHW'),
            precision=jax.lax.Precision.HIGHEST)
        y = y + b[None, :, None, None]
        y = (y - mu[None, :, None, None]) / jnp.sqrt(var[None, :, None, None] + 1e-5)
        y = y * g[None, :, None, None] + bt[None, :, None, None]
        sp = jnp.maximum(y, 0.0) + jnp.log1p(jnp.exp(-jnp.abs(y)))
        return y * jnp.tanh(sp)

    h = conv_bn_mish(x, params['conv1_w'], params['conv1_b'], params['bn1_gamma'],
                     params['bn1_beta'], params['bn1_mean'], params['bn1_var'])
    return conv_bn_mish(h, params['conv2_w'], params['conv2_b'], params['bn2_gamma'],
                        params['bn2_beta'], params['bn2_mean'], params['bn2_var'])


if __name__ == "__main__":
    key = jax.random.PRNGKey(0)
    N, C1, C2 = 2, 4, 4
    H, W = 8, 8                       # x1 spatial; x2 / output spatial = 16x16
    out_channels = 4
    Cin = C1 + C2                     # channels of torch.cat([x2, up(x1)])
    Cmid = Cin // 2                   # bilinear=True -> mid_channels = in_channels // 2
    ks = jax.random.split(key, 14)

    x1 = jax.random.normal(ks[0], (N, C1, H, W), jnp.float32)
    x2 = jax.random.normal(ks[1], (N, C2, 2 * H, 2 * W), jnp.float32)
    params = {
        'conv1_w': 0.1 * jax.random.normal(ks[2], (Cmid, Cin, 3, 3), jnp.float32),
        'conv1_b': 0.1 * jax.random.normal(ks[3], (Cmid,), jnp.float32),
        'bn1_gamma': 1.0 + 0.1 * jax.random.normal(ks[4], (Cmid,), jnp.float32),
        'bn1_beta': 0.1 * jax.random.normal(ks[5], (Cmid,), jnp.float32),
        'bn1_mean': 0.1 * jax.random.normal(ks[6], (Cmid,), jnp.float32),
        'bn1_var': 1.0 + 0.1 * jax.random.uniform(ks[7], (Cmid,), jnp.float32),
        'conv2_w': 0.1 * jax.random.normal(ks[8], (out_channels, Cmid, 3, 3), jnp.float32),
        'conv2_b': 0.1 * jax.random.normal(ks[9], (out_channels,), jnp.float32),
        'bn2_gamma': 1.0 + 0.1 * jax.random.normal(ks[10], (out_channels,), jnp.float32),
        'bn2_beta': 0.1 * jax.random.normal(ks[11], (out_channels,), jnp.float32),
        'bn2_mean': 0.1 * jax.random.normal(ks[12], (out_channels,), jnp.float32),
        'bn2_var': 1.0 + 0.1 * jax.random.uniform(ks[13], (out_channels,), jnp.float32),
    }

    y = up_forward(x1, x2, params)
    y = jax.block_until_ready(y)
    assert y.shape == (N, out_channels, 2 * H, 2 * W)

    # sanity check against a plain-XLA reference
    Uh = jnp.asarray(_bilinear_matrix_align_corners(H, 2 * H))
    UwT = jnp.asarray(_bilinear_matrix_align_corners(W, 2 * W).T)
    y_ref = jax.block_until_ready(_reference(x1, x2, params, Uh, UwT))
    np.testing.assert_allclose(np.asarray(y), np.asarray(y_ref), rtol=1e-2, atol=1e-2)

    print("KERNEL_OK")
</pallas_src>

<mosaic_0001>
module attributes {stable_mosaic.version = 11 : i64} {
  func.func @kernel(%arg0: i32, %arg1: memref<1x4x8x8xf32, #tpu.memory_space<vmem>>, %arg2: memref<1x4x16x16xf32, #tpu.memory_space<vmem>>, %arg3: memref<16x8xf32, #tpu.memory_space<vmem>>, %arg4: memref<8x16xf32, #tpu.memory_space<vmem>>, %arg5: memref<1x8x16x16xf32, #tpu.memory_space<vmem>>) attributes {dimension_semantics = [#tpu.dimension_semantics<parallel>], iteration_bounds = array<i64: 2>, scalar_prefetch = 0 : i64, scratch_operands = 0 : i64, tpu.core_type = #tpu.core_type<tc>, window_params = [{transform_indices = @transform_0, window_bounds = array<i64: 1, 4, 8, 8>}, {transform_indices = @transform_1, window_bounds = array<i64: 1, 4, 16, 16>}, {pipeline_mode = #tpu.pipeline_mode<synchronous>, transform_indices = @transform_2, window_bounds = array<i64: 16, 8>}, {pipeline_mode = #tpu.pipeline_mode<synchronous>, transform_indices = @transform_3, window_bounds = array<i64: 8, 16>}, {transform_indices = @transform_4, window_bounds = array<i64: 1, 8, 16, 16>}]} {
    %c0 = arith.constant 0 : index
    %c0_0 = arith.constant 0 : index
    %c0_1 = arith.constant 0 : index
    %c0_2 = arith.constant 0 : index
    %0 = vector.load %arg2[%c0, %c0_0, %c0_1, %c0_2] : memref<1x4x16x16xf32, #tpu.memory_space<vmem>>, vector<1x4x16x16xf32>
    %1 = vector.shape_cast %0 : vector<1x4x16x16xf32> to vector<4x16x16xf32>
    %c0_3 = arith.constant 0 : index
    %c0_4 = arith.constant 0 : index
    %c0_5 = arith.constant 0 : index
    %c0_6 = arith.constant 0 : index
    %2 = vector.load %arg5[%c0_3, %c0_4, %c0_5, %c0_6] : memref<1x8x16x16xf32, #tpu.memory_space<vmem>>, vector<1x4x16x16xf32>
    %3 = vector.shape_cast %2 : vector<1x4x16x16xf32> to vector<4x16x16xf32>
    %4 = vector.shape_cast %1 : vector<4x16x16xf32> to vector<1x4x16x16xf32>
    tpu.vector_store %arg5[%c0_3, %c0_4, %c0_5, %c0_6], %4 {strides = array<i32>} : memref<1x8x16x16xf32, #tpu.memory_space<vmem>>, vector<1x4x16x16xf32>,
    %c0_7 = arith.constant 0 : index
    %c0_8 = arith.constant 0 : index
    %5 = vector.load %arg3[%c0_7, %c0_8] : memref<16x8xf32, #tpu.memory_space<vmem>>, vector<16x8xf32>
    %c0_9 = arith.constant 0 : index
    %c0_10 = arith.constant 0 : index
    %6 = vector.load %arg4[%c0_9, %c0_10] : memref<8x16xf32, #tpu.memory_space<vmem>>, vector<8x16xf32>
    %c0_11 = arith.constant 0 : index
    %c0_12 = arith.constant 0 : index
    %c0_13 = arith.constant 0 : index
    %c0_14 = arith.constant 0 : index
    %7 = vector.load %arg1[%c0_11, %c0_12, %c0_13, %c0_14] : memref<1x4x8x8xf32, #tpu.memory_space<vmem>>, vector<1x1x8x8xf32>
    %8 = vector.shape_cast %7 : vector<1x1x8x8xf32> to vector<8x8xf32>
    %cst = arith.constant dense<0.000000e+00> : vector<16x8xf32>
    %9 = tpu.matmul %5, %8, %cst {dimension_numbers = #tpu.dot_dimension_numbers<[1], [0], [0], [1], [0, 0, 1, 1], [], []>} : vector<16x8xf32>, vector<8x8xf32>, vector<16x8xf32> -> vector<16x8xf32>
    %cst_15 = arith.constant dense<0.000000e+00> : vector<16x16xf32>
    %10 = tpu.matmul %9, %6, %cst_15 {dimension_numbers = #tpu.dot_dimension_numbers<[1], [0], [0], [1], [0, 0, 1, 1], [], []>} : vector<16x8xf32>, vector<8x16xf32>, vector<16x16xf32> -> vector<16x16xf32>
    %c0_16 = arith.constant 0 : index
    %c4 = arith.constant 4 : index
    %c0_17 = arith.constant 0 : index
    %c0_18 = arith.constant 0 : index
    %11 = vector.load %arg5[%c0_16, %c4, %c0_17, %c0_18] : memref<1x8x16x16xf32, #tpu.memory_space<vmem>>, vector<1x1x16x16xf32>
    %12 = vector.shape_cast %11 : vector<1x1x16x16xf32> to vector<16x16xf32>
    %13 = vector.shape_cast %10 : vector<16x16xf32> to vector<1x1x16x16xf32>
    tpu.vector_store %arg5[%c0_16, %c4, %c0_17, %c0_18], %13 {strides = array<i32>} : memref<1x8x16x16xf32, #tpu.memory_space<vmem>>, vector<1x1x16x16xf32>,
    %c0_19 = arith.constant 0 : index
    %c1 = arith.constant 1 : index
    %c0_20 = arith.constant 0 : index
    %c0_21 = arith.constant 0 : index
    %14 = vector.load %arg1[%c0_19, %c1, %c0_20, %c0_21] : memref<1x4x8x8xf32, #tpu.memory_space<vmem>>, vector<1x1x8x8xf32>
    %15 = vector.shape_cast %14 : vector<1x1x8x8xf32> to vector<8x8xf32>
    %cst_22 = arith.constant dense<0.000000e+00> : vector<16x8xf32>
    %16 = tpu.matmul %5, %15, %cst_22 {dimension_numbers = #tpu.dot_dimension_numbers<[1], [0], [0], [1], [0, 0, 1, 1], [], []>} : vector<16x8xf32>, vector<8x8xf32>, vector<16x8xf32> -> vector<16x8xf32>
    %cst_23 = arith.constant dense<0.000000e+00> : vector<16x16xf32>
    %17 = tpu.matmul %16, %6, %cst_23 {dimension_numbers = #tpu.dot_dimension_numbers<[1], [0], [0], [1], [0, 0, 1, 1], [], []>} : vector<16x8xf32>, vector<8x16xf32>, vector<16x16xf32> -> vector<16x16xf32>
    %c0_24 = arith.constant 0 : index
    %c5 = arith.constant 5 : index
    %c0_25 = arith.constant 0 : index
    %c0_26 = arith.constant 0 : index
    %18 = vector.load %arg5[%c0_24, %c5, %c0_25, %c0_26] : memref<1x8x16x16xf32, #tpu.memory_space<vmem>>, vector<1x1x16x16xf32>
    %19 = vector.shape_cast %18 : vector<1x1x16x16xf32> to vector<16x16xf32>
    %20 = vector.shape_cast %17 : vector<16x16xf32> to vector<1x1x16x16xf32>
    tpu.vector_store %arg5[%c0_24, %c5, %c0_25, %c0_26], %20 {strides = array<i32>} : memref<1x8x16x16xf32, #tpu.memory_space<vmem>>, vector<1x1x16x16xf32>,
    %c0_27 = arith.constant 0 : index
    %c2 = arith.constant 2 : index
    %c0_28 = arith.constant 0 : index
    %c0_29 = arith.constant 0 : index
    %21 = vector.load %arg1[%c0_27, %c2, %c0_28, %c0_29] : memref<1x4x8x8xf32, #tpu.memory_space<vmem>>, vector<1x1x8x8xf32>
    %22 = vector.shape_cast %21 : vector<1x1x8x8xf32> to vector<8x8xf32>
    %cst_30 = arith.constant dense<0.000000e+00> : vector<16x8xf32>
    %23 = tpu.matmul %5, %22, %cst_30 {dimension_numbers = #tpu.dot_dimension_numbers<[1], [0], [0], [1], [0, 0, 1, 1], [], []>} : vector<16x8xf32>, vector<8x8xf32>, vector<16x8xf32> -> vector<16x8xf32>
    %cst_31 = arith.constant dense<0.000000e+00> : vector<16x16xf32>
    %24 = tpu.matmul %23, %6, %cst_31 {dimension_numbers = #tpu.dot_dimension_numbers<[1], [0], [0], [1], [0, 0, 1, 1], [], []>} : vector<16x8xf32>, vector<8x16xf32>, vector<16x16xf32> -> vector<16x16xf32>
    %c0_32 = arith.constant 0 : index
    %c6 = arith.constant 6 : index
    %c0_33 = arith.constant 0 : index
    %c0_34 = arith.constant 0 : index
    %25 = vector.load %arg5[%c0_32, %c6, %c0_33, %c0_34] : memref<1x8x16x16xf32, #tpu.memory_space<vmem>>, vector<1x1x16x16xf32>
    %26 = vector.shape_cast %25 : vector<1x1x16x16xf32> to vector<16x16xf32>
    %27 = vector.shape_cast %24 : vector<16x16xf32> to vector<1x1x16x16xf32>
    tpu.vector_store %arg5[%c0_32, %c6, %c0_33, %c0_34], %27 {strides = array<i32>} : memref<1x8x16x16xf32, #tpu.memory_space<vmem>>, vector<1x1x16x16xf32>,
    %c0_35 = arith.constant 0 : index
    %c3 = arith.constant 3 : index
    %c0_36 = arith.constant 0 : index
    %c0_37 = arith.constant 0 : index
    %28 = vector.load %arg1[%c0_35, %c3, %c0_36, %c0_37] : memref<1x4x8x8xf32, #tpu.memory_space<vmem>>, vector<1x1x8x8xf32>
    %29 = vector.shape_cast %28 : vector<1x1x8x8xf32> to vector<8x8xf32>
    %cst_38 = arith.constant dense<0.000000e+00> : vector<16x8xf32>
    %30 = tpu.matmul %5, %29, %cst_38 {dimension_numbers = #tpu.dot_dimension_numbers<[1], [0], [0], [1], [0, 0, 1, 1], [], []>} : vector<16x8xf32>, vector<8x8xf32>, vector<16x8xf32> -> vector<16x8xf32>
    %cst_39 = arith.constant dense<0.000000e+00> : vector<16x16xf32>
    %31 = tpu.matmul %30, %6, %cst_39 {dimension_numbers = #tpu.dot_dimension_numbers<[1], [0], [0], [1], [0, 0, 1, 1], [], []>} : vector<16x8xf32>, vector<8x16xf32>, vector<16x16xf32> -> vector<16x16xf32>
    %c0_40 = arith.constant 0 : index
    %c7 = arith.constant 7 : index
    %c0_41 = arith.constant 0 : index
    %c0_42 = arith.constant 0 : index
    %32 = vector.load %arg5[%c0_40, %c7, %c0_41, %c0_42] : memref<1x8x16x16xf32, #tpu.memory_space<vmem>>, vector<1x1x16x16xf32>
    %33 = vector.shape_cast %32 : vector<1x1x16x16xf32> to vector<16x16xf32>
    %34 = vector.shape_cast %31 : vector<16x16xf32> to vector<1x1x16x16xf32>
    tpu.vector_store %arg5[%c0_40, %c7, %c0_41, %c0_42], %34 {strides = array<i32>} : memref<1x8x16x16xf32, #tpu.memory_space<vmem>>, vector<1x1x16x16xf32>,
    return
  }
  func.func @transform_0(%arg0: i32) -> (i32, i32, i32, i32) {
    %c0_i32 = arith.constant 0 : i32
    %c0_i32_0 = arith.constant 0 : i32
    %c0_i32_1 = arith.constant 0 : i32
    %c0_i32_2 = arith.constant 0 : i32
    return %arg0, %c0_i32, %c0_i32_0, %c0_i32_1 : i32, i32, i32, i32
  }
  func.func @transform_1(%arg0: i32) -> (i32, i32, i32, i32) {
    %c0_i32 = arith.constant 0 : i32
    %c0_i32_0 = arith.constant 0 : i32
    %c0_i32_1 = arith.constant 0 : i32
    %c0_i32_2 = arith.constant 0 : i32
    return %arg0, %c0_i32, %c0_i32_0, %c0_i32_1 : i32, i32, i32, i32
  }
  func.func @transform_2(%arg0: i32) -> (i32, i32) {
    %c0_i32 = arith.constant 0 : i32
    %c0_i32_0 = arith.constant 0 : i32
    %c0_i32_1 = arith.constant 0 : i32
    return %c0_i32, %c0_i32_0 : i32, i32
  }
  func.func @transform_3(%arg0: i32) -> (i32, i32) {
    %c0_i32 = arith.constant 0 : i32
    %c0_i32_0 = arith.constant 0 : i32
    %c0_i32_1 = arith.constant 0 : i32
    return %c0_i32, %c0_i32_0 : i32, i32
  }
  func.func @transform_4(%arg0: i32) -> (i32, i32, i32, i32) {
    %c0_i32 = arith.constant 0 : i32
    %c0_i32_0 = arith.constant 0 : i32
    %c0_i32_1 = arith.constant 0 : i32
    %c0_i32_2 = arith.constant 0 : i32
    return %arg0, %c0_i32, %c0_i32_0, %c0_i32_1 : i32, i32, i32, i32
  }
}

</mosaic_0001>

<llo_original>
// kernel: tpu_custom_call.1
$region0: #{tpu_custom_call.1}
  #allocation0 [shape = 'u32[]', space=smem, size = 0x4, offset = 0x4, fixed_abs, tag = 'smem constant byte address 0x4 - core index']
  #allocation1 [shape = 'u32[144,128]{1,0:T(1,128)}', space=vmem, size = 0x12000, scoped, tag = 'internal scratch']
  %s0 = inlined_call_operand.hbm [shape: f32[2,4,8,8], index: 0, kind: input, shape index: {}]
  %s1 = inlined_call_operand.hbm [shape: f32[2,4,16,16], index: 1, kind: input, shape index: {}]
  %s2 = inlined_call_operand.vmem [shape: f32[16,8], index: 2, kind: input, shape index: {}]
  %s3 = inlined_call_operand.vmem [shape: f32[8,16], index: 3, kind: input, shape index: {}]
  %s4 = inlined_call_operand.hbm [shape: f32[2,8,16,16], index: 4, kind: output, shape index: {}]
  %s5 = sld [smem:[#allocation0]]
  $region57: #{tpu_custom_call.1} parent=0
    _
  %s7 = ssub.s32 1, %s5
  %s8 = scalar_select 0, %s7, %s5
  $region1: #{tpu_custom_call.1} parent=0
    #allocation2 [shape = 'u8[32768]{0}', space=vmem, size = 0x8000, scoped, tag = 'input window, operand 0']
    #allocation3 [shape = 's32[2]{0}', space=sflag, size = 0x8, scoped, tag = 'scoped memory for tpu_custom_call.1']
    #allocation4 [shape = 's32[2]{0}', space=sflag, size = 0x8, scoped, tag = 'scoped memory for tpu_custom_call.1']
    #allocation5 [shape = 'u8[65536]{0}', space=vmem, size = 0x10000, scoped, tag = 'input window, operand 1']
    #allocation6 [shape = 's32[2]{0}', space=sflag, size = 0x8, scoped, tag = 'scoped memory for tpu_custom_call.1']
    #allocation7 [shape = 'u8[131072]{0}', space=vmem, size = 0x20000, scoped, tag = 'output window, operand 0']
    %9 = vsyncpa [#allocation3], 0
    %s10 = scalar_lea.sflag [#allocation3], 1
    %11 = vsyncpa %s10, 0
    %12 = vsyncpa [#allocation6], 0
    %s13 = scalar_lea.sflag [#allocation6], 1
    %14 = vsyncpa %s13, 0
    %15 = vsyncpa [#allocation4], 0
    %s16 = scalar_lea.sflag [#allocation4], 1
    %17 = vsyncpa %s16, 0
    loop: start=0, step=1, limit=4
    $region2: #{tpu_custom_call.1} parent=1 // loop_pre_header
      _
    $region3: #{tpu_custom_call.1} parent=1 // loop_header
      %s19 = sphi 0, %s23
      %p20 = scmp.ge.s32.totalorder %s19, 4
      %s29 = sphi 0, %s31
      %s32 = sphi 0, %s29
      %s33 = sphi 0, %s32
      %s49 = sphi 0, %s33
      %s55 = sphi 0, %s57
      %s58 = sphi 0, %s55
      %s59 = sphi 0, %s58
      %s75 = sphi 0, %s59
      %s79 = sphi 0, %s79
      %s81 = sphi 0, %s79
      %s82 = sphi 0, %s81
      %s96 = sphi 0, %s82
      %s100 = sphi 0, %s100
      %s102 = sphi 0, %s100
      %s103 = sphi 0, %s102
      %s117 = sphi 0, %s103
      %s123 = sphi 0, %s125
      %s126 = sphi 0, %s123
      %s127 = sphi 0, %s126
      %s143 = sphi 0, %s127
    $region4: #{tpu_custom_call.1} parent=1 // loop_header_branch
      %22 = sbr.rel (%p20) target = $region8
    $region5: #{tpu_custom_call.1} parent=1 // loop_body
      %s24 = ssub.s32 %s19, 1
      %s25 = ssub.s32 %s19, 2
      %s26 = sadd.s32 %s19, 1
      %s27 = ssub.s32 %s19, %s26
      %p28 = scmp.eq.s32.totalorder %s27, 0
      %s30 = sadd.s32 %s29, 1
      %s31 = scalar_select %p28, %s29, %s30
      %p34 = pneg %p28
      %p35 = scmp.eq.s32.totalorder %s19, 1
      %p36 = por %p34, %p35
      %p37 = scmp.ne.s32.totalorder %s29, %s32
      %p38 = scmp.eq.s32.totalorder %s19, 0
      %p39 = por %p37, %p38
      %p40 = scmp.ne.s32.totalorder %s29, %s32
      %p41 = scmp.eq.s32.totalorder %s24, 1
      %p42 = por %p40, %p41
      %p43 = scmp.ne.s32.totalorder %s32, %s33
      %p44 = scmp.eq.s32.totalorder %s24, 0
      %p45 = por %p43, %p44
      %p46 = scmp.ne.s32.totalorder %s32, %s33
      %p47 = scmp.eq.s32.totalorder %s25, 1
      %p48 = por %p46, %p47
      %p50 = scmp.ne.s32.totalorder %s33, %s49
      %p51 = scmp.eq.s32.totalorder %s25, 0
      %p52 = por %p50, %p51
      %s53 = ssub.s32 %s19, %s26
      %p54 = scmp.eq.s32.totalorder %s53, 0
      %s56 = sadd.s32 %s55, 1
      %s57 = scalar_select %p54, %s55, %s56
      %p60 = pneg %p54
      %p61 = scmp.eq.s32.totalorder %s19, 1
      %p62 = por %p60, %p61
      %p63 = scmp.ne.s32.totalorder %s55, %s58
      %p64 = scmp.eq.s32.totalorder %s19, 0
      %p65 = por %p63, %p64
      %p66 = scmp.ne.s32.totalorder %s55, %s58
      %p67 = scmp.eq.s32.totalorder %s24, 1
      %p68 = por %p66, %p67
      %p69 = scmp.ne.s32.totalorder %s58, %s59
      %p70 = scmp.eq.s32.totalorder %s24, 0
      %p71 = por %p69, %p70
      %p72 = scmp.ne.s32.totalorder %s58, %s59
      %p73 = scmp.eq.s32.totalorder %s25, 1
      %p74 = por %p72, %p73
      %p76 = scmp.ne.s32.totalorder %s59, %s75
      %p77 = scmp.eq.s32.totalorder %s25, 0
      %p78 = por %p76, %p77
      %s80 = sadd.s32 %s79, 1
      %p83 = scmp.eq.s32.totalorder %s19, 1
      %p84 = scmp.ne.s32.totalorder %s79, %s81
      %p85 = scmp.eq.s32.totalorder %s19, 0
      %p86 = por %p84, %p85
      %p87 = scmp.ne.s32.totalorder %s79, %s81
      %p88 = scmp.eq.s32.totalorder %s24, 1
      %p89 = por %p87, %p88
      %p90 = scmp.ne.s32.totalorder %s81, %s82
      %p91 = scmp.eq.s32.totalorder %s24, 0
      %p92 = por %p90, %p91
      %p93 = scmp.ne.s32.totalorder %s81, %s82
      %p94 = scmp.eq.s32.totalorder %s25, 1
      %p95 = por %p93, %p94
      %p97 = scmp.ne.s32.totalorder %s82, %s96
      %p98 = scmp.eq.s32.totalorder %s25, 0
      %p99 = por %p97, %p98
      %s101 = sadd.s32 %s100, 1
      %p104 = scmp.eq.s32.totalorder %s19, 1
      %p105 = scmp.ne.s32.totalorder %s100, %s102
      %p106 = scmp.eq.s32.totalorder %s19, 0
      %p107 = por %p105, %p106
      %p108 = scmp.ne.s32.totalorder %s100, %s102
      %p109 = scmp.eq.s32.totalorder %s24, 1
      %p110 = por %p108, %p109
      %p111 = scmp.ne.s32.totalorder %s102, %s103
      %p112 = scmp.eq.s32.totalorder %s24, 0
      %p113 = por %p111, %p112
      %p114 = scmp.ne.s32.totalorder %s102, %s103
      %p115 = scmp.eq.s32.totalorder %s25, 1
      %p116 = por %p114, %p115
      %p118 = scmp.ne.s32.totalorder %s103, %s117
      %p119 = scmp.eq.s32.totalorder %s25, 0
      %p120 = por %p118, %p119
      %s121 = ssub.s32 %s19, %s26
      %p122 = scmp.eq.s32.totalorder %s121, 0
      %s124 = sadd.s32 %s123, 1
      %s125 = scalar_select %p122, %s123, %s124
      %p128 = pneg %p122
      %p129 = scmp.eq.s32.totalorder %s19, 1
      %p130 = por %p128, %p129
      %p131 = scmp.ne.s32.totalorder %s123, %s126
      %p132 = scmp.eq.s32.totalorder %s19, 0
      %p133 = por %p131, %p132
      %p134 = scmp.ne.s32.totalorder %s123, %s126
      %p135 = scmp.eq.s32.totalorder %s24, 1
      %p136 = por %p134, %p135
      %p137 = scmp.ne.s32.totalorder %s126, %s127
      %p138 = scmp.eq.s32.totalorder %s24, 0
      %p139 = por %p137, %p138
      %p140 = scmp.ne.s32.totalorder %s126, %s127
      %p141 = scmp.eq.s32.totalorder %s25, 1
      %p142 = por %p140, %p141
      %p144 = scmp.ne.s32.totalorder %s127, %s143
      %p145 = scmp.eq.s32.totalorder %s25, 0
      %p146 = por %p144, %p145
      %p147 = scmp.le.s32.totalorder 1, %s19
      %p148 = scmp.lt.s32.totalorder %s19, 3
      %p149 = pnand %p147, %p148
      %p150 = pneg %p149
      // Predicated region
      $region9: #{tpu_custom_call.1} parent=5 // pred_check
        _
      $region10: #{tpu_custom_call.1} parent=5 // pred_check_branch
        %152 = sbr.rel (%p149) target = $region12
      $region11: #{tpu_custom_call.1} parent=5 // pred_region
        %s153 = ssub.s32 %s19, 1
        // Predicated region
        $region13: #{tpu_custom_call.1} parent=11 // pred_check
          %p154 = pneg %p92
        $region14: #{tpu_custom_call.1} parent=11 // pred_check_branch
          %156 = sbr.rel (%p154) target = $region16
        $region15: #{tpu_custom_call.1} parent=11 // pred_region
          _
        $region16: #{tpu_custom_call.1} parent=11 // pred_fallthru
          _
        // Predicated region
        $region17: #{tpu_custom_call.1} parent=11 // pred_check
          %p157 = pneg %p113
        $region18: #{tpu_custom_call.1} parent=11 // pred_check_branch
          %159 = sbr.rel (%p157) target = $region20
        $region19: #{tpu_custom_call.1} parent=11 // pred_region
          _
        $region20: #{tpu_custom_call.1} parent=11 // pred_fallthru
          _
      $region12: #{tpu_custom_call.1} parent=5 // pred_fallthru
        _
      %p160 = scmp.lt.s32.totalorder %s19, 2
      // Predicated region
      $region21: #{tpu_custom_call.1} parent=5 // pred_check
        %p161 = pneg %p160
      $region22: #{tpu_custom_call.1} parent=5 // pred_check_branch
        %163 = sbr.rel (%p161) target = $region24
      $region23: #{tpu_custom_call.1} parent=5 // pred_region
        // Predicated region
        $region25: #{tpu_custom_call.1} parent=23 // pred_check
          %p164 = pneg %p39
        $region26: #{tpu_custom_call.1} parent=23 // pred_check_branch
          %166 = sbr.rel (%p164) target = $region28
        $region27: #{tpu_custom_call.1} parent=23 // pred_region
          %s167 = sand.u32 %s29, 1
          %s168 = scalar_lea.sflag [#allocation3], %s167
          %s169 = sand.u32 %s29, 1
          %s170 = smul.addr %s169, 32
          %s171 = scalar_lea.vmem [#allocation2], %s170
          %s173 = ssub.s32 512, 512
          %174 = vsyncadd %s168, %s173
          %s175 = smul.addr %s19, 4
          %s176 = smul.addr %s175, 128
          %s177 = scalar_lea.hbm %s0, %s176
          %s178 = sshll.u32 %s171, 4
          %s179 = int_to_ptr.vmem [resolvable:$true] %s178
          %184 = dma.hbm_to_vmem [thread:$0]  %s177, 512, %s179, %s168, 128, 128, 8
        $region28: #{tpu_custom_call.1} parent=23 // pred_fallthru
          _
        // Predicated region
        $region29: #{tpu_custom_call.1} parent=23 // pred_check
          %p185 = pneg %p65
        $region30: #{tpu_custom_call.1} parent=23 // pred_check_branch
          %187 = sbr.rel (%p185) target = $region32
        $region31: #{tpu_custom_call.1} parent=23 // pred_region
          %s188 = sand.u32 %s55, 1
          %s189 = scalar_lea.sflag [#allocation6], %s188
          %s190 = sand.u32 %s55, 1
          %s191 = smul.addr %s190, 64
          %s192 = scalar_lea.vmem [#allocation5], %s191
          %s194 = ssub.s32 1024, 1024
          %195 = vsyncadd %s189, %s194
          %s196 = smul.addr %s19, 8
          %s197 = smul.addr %s196, 128
          %s198 = scalar_lea.hbm %s1, %s197
          %s199 = sshll.u32 %s192, 4
          %s200 = int_to_ptr.vmem [resolvable:$true] %s199
          %205 = dma.hbm_to_vmem [thread:$0]  %s198, 1024, %s200, %s189, 128, 128, 8
        $region32: #{tpu_custom_call.1} parent=23 // pred_fallthru
          _
      $region24: #{tpu_custom_call.1} parent=5 // pred_fallthru
        _
      %p206 = scmp.le.s32.totalorder 1, %s19
      %p207 = scmp.lt.s32.totalorder %s19, 3
      %p208 = pnand %p206, %p207
      %p209 = pneg %p208
      // Predicated region
      $region33: #{tpu_custom_call.1} parent=5 // pred_check
        _
      $region34: #{tpu_custom_call.1} parent=5 // pred_check_branch
        %211 = sbr.rel (%p208) target = $region36
      $region35: #{tpu_custom_call.1} parent=5 // pred_region
        %s212 = ssub.s32 %s19, 1
        %s213 = sand.u32 %s32, 1
        %s214 = scalar_lea.sflag [#allocation3], %s213
        %s215 = sand.u32 %s32, 1
        %s216 = smul.addr %s215, 32
        %s217 = scalar_lea.vmem [#allocation2], %s216
        // Predicated region
        $region37: #{tpu_custom_call.1} parent=35 // pred_check
          %p218 = pneg %p45
        $region38: #{tpu_custom_call.1} parent=35 // pred_check_branch
          %220 = sbr.rel (%p218) target = $region40
        $region39: #{tpu_custom_call.1} parent=35 // pred_region
          %221 = dma.done %s214, 512
        $region40: #{tpu_custom_call.1} parent=35 // pred_fallthru
          _
        %s222 = sand.u32 %s58, 1
        %s223 = scalar_lea.sflag [#allocation6], %s222
        %s224 = sand.u32 %s58, 1
        %s225 = smul.addr %s224, 64
        %s226 = scalar_lea.vmem [#allocation5], %s225
        // Predicated region
        $region41: #{tpu_custom_call.1} parent=35 // pred_check
          %p227 = pneg %p71
        $region42: #{tpu_custom_call.1} parent=35 // pred_check_branch
          %229 = sbr.rel (%p227) target = $region44
        $region43: #{tpu_custom_call.1} parent=35 // pred_region
          %230 = dma.done %s223, 1024
        $region44: #{tpu_custom_call.1} parent=35 // pred_fallthru
          _
        %s231 = sand.u32 %s32, 1
        %s232 = scalar_lea.sflag [#allocation3], %s231
        %s233 = sand.u32 %s32, 1
        %s234 = smul.addr %s233, 32
        %s235 = scalar_lea.vmem [#allocation2], %s234
        %p236 = pneg %p45
        %p237 = pneg %p42
        %s238 = sand.u32 %s58, 1
        %s239 = scalar_lea.sflag [#allocation6], %s238
        %s240 = sand.u32 %s58, 1
        %s241 = smul.addr %s240, 64
        %s242 = scalar_lea.vmem [#allocation5], %s241
        %p243 = pneg %p71
        %p244 = pneg %p68
        %p245 = pneg %p92
        %p246 = pneg %p89
        %p247 = pneg %p113
        %p248 = pneg %p110
        %p249 = pneg %p139
        %p250 = pneg %p136
        %s251 = sand.u32 %s126, 1
        %s252 = scalar_lea.sflag [#allocation4], %s251
        %s253 = sand.u32 %s126, 1
        %s254 = smul.addr %s253, 128
        %s255 = scalar_lea.vmem [#allocation7], %s254
        %v256 = vld [vmem:[%s226] sm:$0xff]
        %v257 = vld [vmem:[%s226 + $0x8] sm:$0xff]
        %v258 = vld [vmem:[%s226 + $0x10] sm:$0xff]
        %v259 = vld [vmem:[%s226 + $0x18] sm:$0xff]
        %v260 = vld [vmem:[%s226 + $0x20] sm:$0xff]
        %v261 = vld [vmem:[%s226 + $0x28] sm:$0xff]
        %v262 = vld [vmem:[%s226 + $0x30] sm:$0xff]
        %v263 = vld [vmem:[%s226 + $0x38] sm:$0xff]
        %vm264 = vcmask 130048
        %265 = vst.msk [vmem:[%s255] sm:$0xff] %vm264, %v256
        %266 = vst.msk [vmem:[%s255 + $0x8] sm:$0xff] %vm264, %v257
        %267 = vst.msk [vmem:[%s255 + $0x10] sm:$0xff] %vm264, %v258
        %268 = vst.msk [vmem:[%s255 + $0x18] sm:$0xff] %vm264, %v259
        %269 = vst.msk [vmem:[%s255 + $0x20] sm:$0xff] %vm264, %v260
        %270 = vst.msk [vmem:[%s255 + $0x28] sm:$0xff] %vm264, %v261
        %271 = vst.msk [vmem:[%s255 + $0x30] sm:$0xff] %vm264, %v262
        %272 = vst.msk [vmem:[%s255 + $0x38] sm:$0xff] %vm264, %v263
        %v273 = vld [vmem:[%s2] sm:$0xff]
        %v274 = vld [vmem:[%s2 + $0x8] sm:$0xff]
        %v275 = vld [vmem:[%s3] sm:$0xff]
        %v276 = vld [vmem:[%s217] sm:$0xff]
        %vm277 = vcmask 64512
        %v279 = vsel %vm277, %v273, 0
        %v282 = vsel %vm277, %v274, 0
        %284 = vmatprep.subr.mxu0 0.0
        %285 = vmatpush1.msra.mxu0 0.0
        %286 = vmatprep.subr.mxu0 0.0
        %287 = vmatpush1.msra.mxu0 0.0
        %288 = vmatprep.subr.mxu0 0.0
        %289 = vmatpush1.msra.mxu0 0.0
        %290 = vmatprep.subr.mxu0 0.0
        %291 = vmatpush1.msra.mxu0 0.0
        %292 = vmatprep.subr.mxu0 0.0
        %293 = vmatpush1.msra.mxu0 0.0
        %294 = vmatprep.subr.mxu0 0.0
        %295 = vmatpush1.msra.mxu0 0.0
        %296 = vmatprep.subr.mxu0 0.0
        %297 = vmatpush1.msra.mxu0 0.0
        %298 = vmatprep.subr.mxu0 0.0
        %299 = vmatpush1.msra.mxu0 0.0
        %300 = vmatprep.subr.mxu0 0.0
        %301 = vmatpush1.msra.mxu0 0.0
        %302 = vmatprep.subr.mxu0 0.0
        %303 = vmatpush1.msra.mxu0 0.0
        %304 = vmatprep.subr.mxu0 0.0
        %305 = vmatpush1.msra.mxu0 0.0
        %306 = vmatprep.subr.mxu0 0.0
        %307 = vmatpush1.msra.mxu0 0.0
        %308 = vmatprep.subr.mxu0 0.0
        %309 = vmatpush1.msra.mxu0 0.0
        %310 = vmatprep.subr.mxu0 0.0
        %311 = vmatpush1.msra.mxu0 0.0
        %312 = vmatprep.subr.mxu0 0.0
        %313 = vmatpush1.msra.mxu0 0.0
        %314 = vmatprep.subr.mxu0 0.0
        %315 = vmatpush1.msra.mxu0 %v276
        %316 = vmatprep.subr.mxu0 0.0
        %317 = vmatpush2.msra.mxu0 0.0
        %318 = vmatprep.subr.mxu0 0.0
        %319 = vmatpush2.msra.mxu0 0.0
        %320 = vmatprep.subr.mxu0 0.0
        %321 = vmatpush2.msra.mxu0 0.0
        %322 = vmatprep.subr.mxu0 0.0
        %323 = vmatpush2.msra.mxu0 0.0
        %324 = vmatprep.subr.mxu0 0.0
        %325 = vmatpush2.msra.mxu0 0.0
        %326 = vmatprep.subr.mxu0 0.0
        %327 = vmatpush2.msra.mxu0 0.0
        %328 = vmatprep.subr.mxu0 0.0
        %329 = vmatpush2.msra.mxu0 0.0
        %330 = vmatprep.subr.mxu0 0.0
        %331 = vmatpush2.msra.mxu0 0.0
        %332 = vmatprep.subr.mxu0 0.0
        %333 = vmatpush2.msra.mxu0 0.0
        %334 = vmatprep.subr.mxu0 0.0
        %335 = vmatpush2.msra.mxu0 0.0
        %336 = vmatprep.subr.mxu0 0.0
        %337 = vmatpush2.msra.mxu0 0.0
        %338 = vmatprep.subr.mxu0 0.0
        %339 = vmatpush2.msra.mxu0 0.0
        %340 = vmatprep.subr.mxu0 0.0
        %341 = vmatpush2.msra.mxu0 0.0
        %342 = vmatprep.subr.mxu0 0.0
        %343 = vmatpush2.msra.mxu0 0.0
        %344 = vmatprep.subr.mxu0 0.0
        %345 = vmatpush2.msra.mxu0 0.0
        %346 = vmatprep.subr.mxu0 0.0
        %347 = vmatpush2.msra.mxu0 0.0
        %348 = vmatprep.mubr.f32.mxu0 0.0
        %349 = vmatmul.mubr.f32.gmra.mxu0 %v279
        %v350 = vpop.f32.mrf.mxu0
        %v351 = vadd.f32 0.0, %v350
        %v352 = vpop.f32.mrf.mxu0
        %353 = vmatprep.mubr.f32.mxu0 0.0
        %354 = vmatmul.mubr.f32.gmra.mxu0 %v282
        %v355 = vpop.f32.mrf.mxu0
        %v356 = vadd.f32 0.0, %v355
        %v357 = vpop.f32.mrf.mxu0
        %358 = vdwg.mxu0
        %v360 = vsel %vm277, %v351, 0
        %v363 = vsel %vm277, %v356, 0
        %365 = vmatprep.subr.mxu0 0.0
        %366 = vmatpush1.msra.mxu0 0.0
        %367 = vmatprep.subr.mxu0 0.0
        %368 = vmatpush1.msra.mxu0 0.0
        %369 = vmatprep.subr.mxu0 0.0
        %370 = vmatpush1.msra.mxu0 0.0
        %371 = vmatprep.subr.mxu0 0.0
        %372 = vmatpush1.msra.mxu0 0.0
        %373 = vmatprep.subr.mxu0 0.0
        %374 = vmatpush1.msra.mxu0 0.0
        %375 = vmatprep.subr.mxu0 0.0
        %376 = vmatpush1.msra.mxu0 0.0
        %377 = vmatprep.subr.mxu0 0.0
        %378 = vmatpush1.msra.mxu0 0.0
        %379 = vmatprep.subr.mxu0 0.0
        %380 = vmatpush1.msra.mxu0 0.0
        %381 = vmatprep.subr.mxu0 0.0
        %382 = vmatpush1.msra.mxu0 0.0
        %383 = vmatprep.subr.mxu0 0.0
        %384 = vmatpush1.msra.mxu0 0.0
        %385 = vmatprep.subr.mxu0 0.0
        %386 = vmatpush1.msra.mxu0 0.0
        %387 = vmatprep.subr.mxu0 0.0
        %388 = vmatpush1.msra.mxu0 0.0
        %389 = vmatprep.subr.mxu0 0.0
        %390 = vmatpush1.msra.mxu0 0.0
        %391 = vmatprep.subr.mxu0 0.0
        %392 = vmatpush1.msra.mxu0 0.0
        %393 = vmatprep.subr.mxu0 0.0
        %394 = vmatpush1.msra.mxu0 0.0
        %395 = vmatprep.subr.mxu0 0.0
        %396 = vmatpush1.msra.mxu0 %v275
        %397 = vmatprep.subr.mxu0 0.0
        %398 = vmatpush2.msra.mxu0 0.0
        %399 = vmatprep.subr.mxu0 0.0
        %400 = vmatpush2.msra.mxu0 0.0
        %401 = vmatprep.subr.mxu0 0.0
        %402 = vmatpush2.msra.mxu0 0.0
        %403 = vmatprep.subr.mxu0 0.0
        %404 = vmatpush2.msra.mxu0 0.0
        %405 = vmatprep.subr.mxu0 0.0
        %406 = vmatpush2.msra.mxu0 0.0
        %407 = vmatprep.subr.mxu0 0.0
        %408 = vmatpush2.msra.mxu0 0.0
        %409 = vmatprep.subr.mxu0 0.0
        %410 = vmatpush2.msra.mxu0 0.0
        %411 = vmatprep.subr.mxu0 0.0
        %412 = vmatpush2.msra.mxu0 0.0
        %413 = vmatprep.subr.mxu0 0.0
        %414 = vmatpush2.msra.mxu0 0.0
        %415 = vmatprep.subr.mxu0 0.0
        %416 = vmatpush2.msra.mxu0 0.0
        %417 = vmatprep.subr.mxu0 0.0
        %418 = vmatpush2.msra.mxu0 0.0
        %419 = vmatprep.subr.mxu0 0.0
        %420 = vmatpush2.msra.mxu0 0.0
        %421 = vmatprep.subr.mxu0 0.0
        %422 = vmatpush2.msra.mxu0 0.0
        %423 = vmatprep.subr.mxu0 0.0
        %424 = vmatpush2.msra.mxu0 0.0
        %425 = vmatprep.subr.mxu0 0.0
        %426 = vmatpush2.msra.mxu0 0.0
        %427 = vmatprep.subr.mxu0 0.0
        %428 = vmatpush2.msra.mxu0 0.0
        %429 = vmatprep.mubr.f32.mxu0 0.0
        %430 = vmatmul.mubr.f32.gmra.mxu0 %v360
        %v431 = vpop.f32.mrf.mxu0
        %v432 = vadd.f32 0.0, %v431
        %v433 = vpop.f32.mrf.mxu0
        %434 = vmatprep.mubr.f32.mxu0 0.0
        %435 = vmatmul.mubr.f32.gmra.mxu0 %v363
        %v436 = vpop.f32.mrf.mxu0
        %v437 = vadd.f32 0.0, %v436
        %v438 = vpop.f32.mrf.mxu0
        %439 = vdwg.mxu0
        %s440 = scalar_lea.vmem %s255, 64 [#allocation7]
        %441 = vst.msk [vmem:[%s440] sm:$0xff] %vm264, %v432
        %442 = vst.msk [vmem:[%s440 + $0x8] sm:$0xff] %vm264, %v437
        %s443 = scalar_lea.vmem %s217, 8 [#allocation2]
        %v444 = vld [vmem:[%s443] sm:$0xff]
        %445 = vmatprep.subr.mxu0 0.0
        %446 = vmatpush1.msra.mxu0 0.0
        %447 = vmatprep.subr.mxu0 0.0
        %448 = vmatpush1.msra.mxu0 0.0
        %449 = vmatprep.subr.mxu0 0.0
        %450 = vmatpush1.msra.mxu0 0.0
        %451 = vmatprep.subr.mxu0 0.0
        %452 = vmatpush1.msra.mxu0 0.0
        %453 = vmatprep.subr.mxu0 0.0
        %454 = vmatpush1.msra.mxu0 0.0
        %455 = vmatprep.subr.mxu0 0.0
        %456 = vmatpush1.msra.mxu0 0.0
        %457 = vmatprep.subr.mxu0 0.0
        %458 = vmatpush1.msra.mxu0 0.0
        %459 = vmatprep.subr.mxu0 0.0
        %460 = vmatpush1.msra.mxu0 0.0
        %461 = vmatprep.subr.mxu0 0.0
        %462 = vmatpush1.msra.mxu0 0.0
        %463 = vmatprep.subr.mxu0 0.0
        %464 = vmatpush1.msra.mxu0 0.0
        %465 = vmatprep.subr.mxu0 0.0
        %466 = vmatpush1.msra.mxu0 0.0
        %467 = vmatprep.subr.mxu0 0.0
        %468 = vmatpush1.msra.mxu0 0.0
        %469 = vmatprep.subr.mxu0 0.0
        %470 = vmatpush1.msra.mxu0 0.0
        %471 = vmatprep.subr.mxu0 0.0
        %472 = vmatpush1.msra.mxu0 0.0
        %473 = vmatprep.subr.mxu0 0.0
        %474 = vmatpush1.msra.mxu0 0.0
        %475 = vmatprep.subr.mxu0 0.0
        %476 = vmatpush1.msra.mxu0 %v444
        %477 = vmatprep.subr.mxu0 0.0
        %478 = vmatpush2.msra.mxu0 0.0
        %479 = vmatprep.subr.mxu0 0.0
        %480 = vmatpush2.msra.mxu0 0.0
        %481 = vmatprep.subr.mxu0 0.0
        %482 = vmatpush2.msra.mxu0 0.0
        %483 = vmatprep.subr.mxu0 0.0
        %484 = vmatpush2.msra.mxu0 0.0
        %485 = vmatprep.subr.mxu0 0.0
        %486 = vmatpush2.msra.mxu0 0.0
        %487 = vmatprep.subr.mxu0 0.0
        %488 = vmatpush2.msra.mxu0 0.0
        %489 = vmatprep.subr.mxu0 0.0
        %490 = vmatpush2.msra.mxu0 0.0
        %491 = vmatprep.subr.mxu0 0.0
        %492 = vmatpush2.msra.mxu0 0.0
        %493 = vmatprep.subr.mxu0 0.0
        %494 = vmatpush2.msra.mxu0 0.0
        %495 = vmatprep.subr.mxu0 0.0
        %496 = vmatpush2.msra.mxu0 0.0
        %497 = vmatprep.subr.mxu0 0.0
        %498 = vmatpush2.msra.mxu0 0.0
        %499 = vmatprep.subr.mxu0 0.0
        %500 = vmatpush2.msra.mxu0 0.0
        %501 = vmatprep.subr.mxu0 0.0
        %502 = vmatpush2.msra.mxu0 0.0
        %503 = vmatprep.subr.mxu0 0.0
        %504 = vmatpush2.msra.mxu0 0.0
        %505 = vmatprep.subr.mxu0 0.0
        %506 = vmatpush2.msra.mxu0 0.0
        %507 = vmatprep.subr.mxu0 0.0
        %508 = vmatpush2.msra.mxu0 0.0
        %509 = vmatprep.mubr.f32.mxu0 0.0
        %510 = vmatmul.mubr.f32.gmra.mxu0 %v279
        %v511 = vpop.f32.mrf.mxu0
        %v512 = vadd.f32 0.0, %v511
        %v513 = vpop.f32.mrf.mxu0
        %514 = vmatprep.mubr.f32.mxu0 0.0
        %515 = vmatmul.mubr.f32.gmra.mxu0 %v282
        %v516 = vpop.f32.mrf.mxu0
        %v517 = vadd.f32 0.0, %v516
        %v518 = vpop.f32.mrf.mxu0
        %519 = vdwg.mxu0
        %v521 = vsel %vm277, %v512, 0
        %v524 = vsel %vm277, %v517, 0
        %526 = vmatprep.subr.mxu0 0.0
        %527 = vmatpush1.msra.mxu0 0.0
        %528 = vmatprep.subr.mxu0 0.0
        %529 = vmatpush1.msra.mxu0 0.0
        %530 = vmatprep.subr.mxu0 0.0
        %531 = vmatpush1.msra.mxu0 0.0
        %532 = vmatprep.subr.mxu0 0.0
        %533 = vmatpush1.msra.mxu0 0.0
        %534 = vmatprep.subr.mxu0 0.0
        %535 = vmatpush1.msra.mxu0 0.0
        %536 = vmatprep.subr.mxu0 0.0
        %537 = vmatpush1.msra.mxu0 0.0
        %538 = vmatprep.subr.mxu0 0.0
        %539 = vmatpush1.msra.mxu0 0.0
        %540 = vmatprep.subr.mxu0 0.0
        %541 = vmatpush1.msra.mxu0 0.0
        %542 = vmatprep.subr.mxu0 0.0
        %543 = vmatpush1.msra.mxu0 0.0
        %544 = vmatprep.subr.mxu0 0.0
        %545 = vmatpush1.msra.mxu0 0.0
        %546 = vmatprep.subr.mxu0 0.0
        %547 = vmatpush1.msra.mxu0 0.0
        %548 = vmatprep.subr.mxu0 0.0
        %549 = vmatpush1.msra.mxu0 0.0
        %550 = vmatprep.subr.mxu0 0.0
        %551 = vmatpush1.msra.mxu0 0.0
        %552 = vmatprep.subr.mxu0 0.0
        %553 = vmatpush1.msra.mxu0 0.0
        %554 = vmatprep.subr.mxu0 0.0
        %555 = vmatpush1.msra.mxu0 0.0
        %556 = vmatprep.subr.mxu0 0.0
        %557 = vmatpush1.msra.mxu0 %v275
        %558 = vmatprep.subr.mxu0 0.0
        %559 = vmatpush2.msra.mxu0 0.0
        %560 = vmatprep.subr.mxu0 0.0
        %561 = vmatpush2.msra.mxu0 0.0
        %562 = vmatprep.subr.mxu0 0.0
        %563 = vmatpush2.msra.mxu0 0.0
        %564 = vmatprep.subr.mxu0 0.0
        %565 = vmatpush2.msra.mxu0 0.0
        %566 = vmatprep.subr.mxu0 0.0
        %567 = vmatpush2.msra.mxu0 0.0
        %568 = vmatprep.subr.mxu0 0.0
        %569 = vmatpush2.msra.mxu0 0.0
        %570 = vmatprep.subr.mxu0 0.0
        %571 = vmatpush2.msra.mxu0 0.0
        %572 = vmatprep.subr.mxu0 0.0
        %573 = vmatpush2.msra.mxu0 0.0
        %574 = vmatprep.subr.mxu0 0.0
        %575 = vmatpush2.msra.mxu0 0.0
        %576 = vmatprep.subr.mxu0 0.0
        %577 = vmatpush2.msra.mxu0 0.0
        %578 = vmatprep.subr.mxu0 0.0
        %579 = vmatpush2.msra.mxu0 0.0
        %580 = vmatprep.subr.mxu0 0.0
        %581 = vmatpush2.msra.mxu0 0.0
        %582 = vmatprep.subr.mxu0 0.0
        %583 = vmatpush2.msra.mxu0 0.0
        %584 = vmatprep.subr.mxu0 0.0
        %585 = vmatpush2.msra.mxu0 0.0
        %586 = vmatprep.subr.mxu0 0.0
        %587 = vmatpush2.msra.mxu0 0.0
        %588 = vmatprep.subr.mxu0 0.0
        %589 = vmatpush2.msra.mxu0 0.0
        %590 = vmatprep.mubr.f32.mxu0 0.0
        %591 = vmatmul.mubr.f32.gmra.mxu0 %v521
        %v592 = vpop.f32.mrf.mxu0
        %v593 = vadd.f32 0.0, %v592
        %v594 = vpop.f32.mrf.mxu0
        %595 = vmatprep.mubr.f32.mxu0 0.0
        %596 = vmatmul.mubr.f32.gmra.mxu0 %v524
        %v597 = vpop.f32.mrf.mxu0
        %v598 = vadd.f32 0.0, %v597
        %v599 = vpop.f32.mrf.mxu0
        %600 = vdwg.mxu0
        %s601 = scalar_lea.vmem %s255, 80 [#allocation7]
        %602 = vst.msk [vmem:[%s601] sm:$0xff] %vm264, %v593
        %603 = vst.msk [vmem:[%s601 + $0x8] sm:$0xff] %vm264, %v598
        %s604 = scalar_lea.vmem %s217, 16 [#allocation2]
        %v605 = vld [vmem:[%s604] sm:$0xff]
        %606 = vmatprep.subr.mxu0 0.0
        %607 = vmatpush1.msra.mxu0 0.0
        %608 = vmatprep.subr.mxu0 0.0
        %609 = vmatpush1.msra.mxu0 0.0
        %610 = vmatprep.subr.mxu0 0.0
        %611 = vmatpush1.msra.mxu0 0.0
        %612 = vmatprep.subr.mxu0 0.0
        %613 = vmatpush1.msra.mxu0 0.0
        %614 = vmatprep.subr.mxu0 0.0
        %615 = vmatpush1.msra.mxu0 0.0
        %616 = vmatprep.subr.mxu0 0.0
        %617 = vmatpush1.msra.mxu0 0.0
        %618 = vmatprep.subr.mxu0 0.0
        %619 = vmatpush1.msra.mxu0 0.0
        %620 = vmatprep.subr.mxu0 0.0
        %621 = vmatpush1.msra.mxu0 0.0
        %622 = vmatprep.subr.mxu0 0.0
        %623 = vmatpush1.msra.mxu0 0.0
        %624 = vmatprep.subr.mxu0 0.0
        %625 = vmatpush1.msra.mxu0 0.0
        %626 = vmatprep.subr.mxu0 0.0
        %627 = vmatpush1.msra.mxu0 0.0
        %628 = vmatprep.subr.mxu0 0.0
        %629 = vmatpush1.msra.mxu0 0.0
        %630 = vmatprep.subr.mxu0 0.0
        %631 = vmatpush1.msra.mxu0 0.0
        %632 = vmatprep.subr.mxu0 0.0
        %633 = vmatpush1.msra.mxu0 0.0
        %634 = vmatprep.subr.mxu0 0.0
        %635 = vmatpush1.msra.mxu0 0.0
        %636 = vmatprep.subr.mxu0 0.0
        %637 = vmatpush1.msra.mxu0 %v605
        %638 = vmatprep.subr.mxu0 0.0
        %639 = vmatpush2.msra.mxu0 0.0
        %640 = vmatprep.subr.mxu0 0.0
        %641 = vmatpush2.msra.mxu0 0.0
        %642 = vmatprep.subr.mxu0 0.0
        %643 = vmatpush2.msra.mxu0 0.0
        %644 = vmatprep.subr.mxu0 0.0
        %645 = vmatpush2.msra.mxu0 0.0
        %646 = vmatprep.subr.mxu0 0.0
        %647 = vmatpush2.msra.mxu0 0.0
        %648 = vmatprep.subr.mxu0 0.0
        %649 = vmatpush2.msra.mxu0 0.0
        %650 = vmatprep.subr.mxu0 0.0
        %651 = vmatpush2.msra.mxu0 0.0
        %652 = vmatprep.subr.mxu0 0.0
        %653 = vmatpush2.msra.mxu0 0.0
        %654 = vmatprep.subr.mxu0 0.0
        %655 = vmatpush2.msra.mxu0 0.0
        %656 = vmatprep.subr.mxu0 0.0
        %657 = vmatpush2.msra.mxu0 0.0
        %658 = vmatprep.subr.mxu0 0.0
        %659 = vmatpush2.msra.mxu0 0.0
        %660 = vmatprep.subr.mxu0 0.0
        %661 = vmatpush2.msra.mxu0 0.0
        %662 = vmatprep.subr.mxu0 0.0
        %663 = vmatpush2.msra.mxu0 0.0
        %664 = vmatprep.subr.mxu0 0.0
        %665 = vmatpush2.msra.mxu0 0.0
        %666 = vmatprep.subr.mxu0 0.0
        %667 = vmatpush2.msra.mxu0 0.0
        %668 = vmatprep.subr.mxu0 0.0
        %669 = vmatpush2.msra.mxu0 0.0
        %670 = vmatprep.mubr.f32.mxu0 0.0
        %671 = vmatmul.mubr.f32.gmra.mxu0 %v279
        %v672 = vpop.f32.mrf.mxu0
        %v673 = vadd.f32 0.0, %v672
        %v674 = vpop.f32.mrf.mxu0
        %675 = vmatprep.mubr.f32.mxu0 0.0
        %676 = vmatmul.mubr.f32.gmra.mxu0 %v282
        %v677 = vpop.f32.mrf.mxu0
        %v678 = vadd.f32 0.0, %v677
        %v679 = vpop.f32.mrf.mxu0
        %680 = vdwg.mxu0
        %v682 = vsel %vm277, %v673, 0
        %v685 = vsel %vm277, %v678, 0
        %687 = vmatprep.subr.mxu0 0.0
        %688 = vmatpush1.msra.mxu0 0.0
        %689 = vmatprep.subr.mxu0 0.0
        %690 = vmatpush1.msra.mxu0 0.0
        %691 = vmatprep.subr.mxu0 0.0
        %692 = vmatpush1.msra.mxu0 0.0
        %693 = vmatprep.subr.mxu0 0.0
        %694 = vmatpush1.msra.mxu0 0.0
        %695 = vmatprep.subr.mxu0 0.0
        %696 = vmatpush1.msra.mxu0 0.0
        %697 = vmatprep.subr.mxu0 0.0
        %698 = vmatpush1.msra.mxu0 0.0
        %699 = vmatprep.subr.mxu0 0.0
        %700 = vmatpush1.msra.mxu0 0.0
        %701 = vmatprep.subr.mxu0 0.0
        %702 = vmatpush1.msra.mxu0 0.0
        %703 = vmatprep.subr.mxu0 0.0
        %704 = vmatpush1.msra.mxu0 0.0
        %705 = vmatprep.subr.mxu0 0.0
        %706 = vmatpush1.msra.mxu0 0.0
        %707 = vmatprep.subr.mxu0 0.0
        %708 = vmatpush1.msra.mxu0 0.0
        %709 = vmatprep.subr.mxu0 0.0
        %710 = vmatpush1.msra.mxu0 0.0
        %711 = vmatprep.subr.mxu0 0.0
        %712 = vmatpush1.msra.mxu0 0.0
        %713 = vmatprep.subr.mxu0 0.0
        %714 = vmatpush1.msra.mxu0 0.0
        %715 = vmatprep.subr.mxu0 0.0
        %716 = vmatpush1.msra.mxu0 0.0
        %717 = vmatprep.subr.mxu0 0.0
        %718 = vmatpush1.msra.mxu0 %v275
        %719 = vmatprep.subr.mxu0 0.0
        %720 = vmatpush2.msra.mxu0 0.0
        %721 = vmatprep.subr.mxu0 0.0
        %722 = vmatpush2.msra.mxu0 0.0
        %723 = vmatprep.subr.mxu0 0.0
        %724 = vmatpush2.msra.mxu0 0.0
        %725 = vmatprep.subr.mxu0 0.0
        %726 = vmatpush2.msra.mxu0 0.0
        %727 = vmatprep.subr.mxu0 0.0
        %728 = vmatpush2.msra.mxu0 0.0
        %729 = vmatprep.subr.mxu0 0.0
        %730 = vmatpush2.msra.mxu0 0.0
        %731 = vmatprep.subr.mxu0 0.0
        %732 = vmatpush2.msra.mxu0 0.0
        %733 = vmatprep.subr.mxu0 0.0
        %734 = vmatpush2.msra.mxu0 0.0
        %735 = vmatprep.subr.mxu0 0.0
        %736 = vmatpush2.msra.mxu0 0.0
        %737 = vmatprep.subr.mxu0 0.0
        %738 = vmatpush2.msra.mxu0 0.0
        %739 = vmatprep.subr.mxu0 0.0
        %740 = vmatpush2.msra.mxu0 0.0
        %741 = vmatprep.subr.mxu0 0.0
        %742 = vmatpush2.msra.mxu0 0.0
        %743 = vmatprep.subr.mxu0 0.0
        %744 = vmatpush2.msra.mxu0 0.0
        %745 = vmatprep.subr.mxu0 0.0
        %746 = vmatpush2.msra.mxu0 0.0
        %747 = vmatprep.subr.mxu0 0.0
        %748 = vmatpush2.msra.mxu0 0.0
        %749 = vmatprep.subr.mxu0 0.0
        %750 = vmatpush2.msra.mxu0 0.0
        %751 = vmatprep.mubr.f32.mxu0 0.0
        %752 = vmatmul.mubr.f32.gmra.mxu0 %v682
        %v753 = vpop.f32.mrf.mxu0
        %v754 = vadd.f32 0.0, %v753
        %v755 = vpop.f32.mrf.mxu0
        %756 = vmatprep.mubr.f32.mxu0 0.0
        %757 = vmatmul.mubr.f32.gmra.mxu0 %v685
        %v758 = vpop.f32.mrf.mxu0
        %v759 = vadd.f32 0.0, %v758
        %v760 = vpop.f32.mrf.mxu0
        %761 = vdwg.mxu0
        %s762 = scalar_lea.vmem %s255, 96 [#allocation7]
        %763 = vst.msk [vmem:[%s762] sm:$0xff] %vm264, %v754
        %764 = vst.msk [vmem:[%s762 + $0x8] sm:$0xff] %vm264, %v759
        %s765 = scalar_lea.vmem %s217, 24 [#allocation2]
        %v766 = vld [vmem:[%s765] sm:$0xff]
        %767 = vmatprep.subr.mxu0 0.0
        %768 = vmatpush1.msra.mxu0 0.0
        %769 = vmatprep.subr.mxu0 0.0
        %770 = vmatpush1.msra.mxu0 0.0
        %771 = vmatprep.subr.mxu0 0.0
        %772 = vmatpush1.msra.mxu0 0.0
        %773 = vmatprep.subr.mxu0 0.0
        %774 = vmatpush1.msra.mxu0 0.0
        %775 = vmatprep.subr.mxu0 0.0
        %776 = vmatpush1.msra.mxu0 0.0
        %777 = vmatprep.subr.mxu0 0.0
        %778 = vmatpush1.msra.mxu0 0.0
        %779 = vmatprep.subr.mxu0 0.0
        %780 = vmatpush1.msra.mxu0 0.0
        %781 = vmatprep.subr.mxu0 0.0
        %782 = vmatpush1.msra.mxu0 0.0
        %783 = vmatprep.subr.mxu0 0.0
        %784 = vmatpush1.msra.mxu0 0.0
        %785 = vmatprep.subr.mxu0 0.0
        %786 = vmatpush1.msra.mxu0 0.0
        %787 = vmatprep.subr.mxu0 0.0
        %788 = vmatpush1.msra.mxu0 0.0
        %789 = vmatprep.subr.mxu0 0.0
        %790 = vmatpush1.msra.mxu0 0.0
        %791 = vmatprep.subr.mxu0 0.0
        %792 = vmatpush1.msra.mxu0 0.0
        %793 = vmatprep.subr.mxu0 0.0
        %794 = vmatpush1.msra.mxu0 0.0
        %795 = vmatprep.subr.mxu0 0.0
        %796 = vmatpush1.msra.mxu0 0.0
        %797 = vmatprep.subr.mxu0 0.0
        %798 = vmatpush1.msra.mxu0 %v766
        %799 = vmatprep.subr.mxu0 0.0
        %800 = vmatpush2.msra.mxu0 0.0
        %801 = vmatprep.subr.mxu0 0.0
        %802 = vmatpush2.msra.mxu0 0.0
        %803 = vmatprep.subr.mxu0 0.0
        %804 = vmatpush2.msra.mxu0 0.0
        %805 = vmatprep.subr.mxu0 0.0
        %806 = vmatpush2.msra.mxu0 0.0
        %807 = vmatprep.subr.mxu0 0.0
        %808 = vmatpush2.msra.mxu0 0.0
        %809 = vmatprep.subr.mxu0 0.0
        %810 = vmatpush2.msra.mxu0 0.0
        %811 = vmatprep.subr.mxu0 0.0
        %812 = vmatpush2.msra.mxu0 0.0
        %813 = vmatprep.subr.mxu0 0.0
        %814 = vmatpush2.msra.mxu0 0.0
        %815 = vmatprep.subr.mxu0 0.0
        %816 = vmatpush2.msra.mxu0 0.0
        %817 = vmatprep.subr.mxu0 0.0
        %818 = vmatpush2.msra.mxu0 0.0
        %819 = vmatprep.subr.mxu0 0.0
        %820 = vmatpush2.msra.mxu0 0.0
        %821 = vmatprep.subr.mxu0 0.0
        %822 = vmatpush2.msra.mxu0 0.0
        %823 = vmatprep.subr.mxu0 0.0
        %824 = vmatpush2.msra.mxu0 0.0
        %825 = vmatprep.subr.mxu0 0.0
        %826 = vmatpush2.msra.mxu0 0.0
        %827 = vmatprep.subr.mxu0 0.0
        %828 = vmatpush2.msra.mxu0 0.0
        %829 = vmatprep.subr.mxu0 0.0
        %830 = vmatpush2.msra.mxu0 0.0
        %831 = vmatprep.mubr.f32.mxu0 0.0
        %832 = vmatmul.mubr.f32.gmra.mxu0 %v279
        %v833 = vpop.f32.mrf.mxu0
        %v834 = vadd.f32 0.0, %v833
        %v835 = vpop.f32.mrf.mxu0
        %836 = vmatprep.mubr.f32.mxu0 0.0
        %837 = vmatmul.mubr.f32.gmra.mxu0 %v282
        %v838 = vpop.f32.mrf.mxu0
        %v839 = vadd.f32 0.0, %v838
        %v840 = vpop.f32.mrf.mxu0
        %841 = vdwg.mxu0
        %v843 = vsel %vm277, %v834, 0
        %v846 = vsel %vm277, %v839, 0
        %848 = vmatprep.subr.mxu0 0.0
        %849 = vmatpush1.msra.mxu0 0.0
        %850 = vmatprep.subr.mxu0 0.0
        %851 = vmatpush1.msra.mxu0 0.0
        %852 = vmatprep.subr.mxu0 0.0
        %853 = vmatpush1.msra.mxu0 0.0
        %854 = vmatprep.subr.mxu0 0.0
        %855 = vmatpush1.msra.mxu0 0.0
        %856 = vmatprep.subr.mxu0 0.0
        %857 = vmatpush1.msra.mxu0 0.0
        %858 = vmatprep.subr.mxu0 0.0
        %859 = vmatpush1.msra.mxu0 0.0
        %860 = vmatprep.subr.mxu0 0.0
        %861 = vmatpush1.msra.mxu0 0.0
        %862 = vmatprep.subr.mxu0 0.0
        %863 = vmatpush1.msra.mxu0 0.0
        %864 = vmatprep.subr.mxu0 0.0
        %865 = vmatpush1.msra.mxu0 0.0
        %866 = vmatprep.subr.mxu0 0.0
        %867 = vmatpush1.msra.mxu0 0.0
        %868 = vmatprep.subr.mxu0 0.0
        %869 = vmatpush1.msra.mxu0 0.0
        %870 = vmatprep.subr.mxu0 0.0
        %871 = vmatpush1.msra.mxu0 0.0
        %872 = vmatprep.subr.mxu0 0.0
        %873 = vmatpush1.msra.mxu0 0.0
        %874 = vmatprep.subr.mxu0 0.0
        %875 = vmatpush1.msra.mxu0 0.0
        %876 = vmatprep.subr.mxu0 0.0
        %877 = vmatpush1.msra.mxu0 0.0
        %878 = vmatprep.subr.mxu0 0.0
        %879 = vmatpush1.msra.mxu0 %v275
        %880 = vmatprep.subr.mxu0 0.0
        %881 = vmatpush2.msra.mxu0 0.0
        %882 = vmatprep.subr.mxu0 0.0
        %883 = vmatpush2.msra.mxu0 0.0
        %884 = vmatprep.subr.mxu0 0.0
        %885 = vmatpush2.msra.mxu0 0.0
        %886 = vmatprep.subr.mxu0 0.0
        %887 = vmatpush2.msra.mxu0 0.0
        %888 = vmatprep.subr.mxu0 0.0
        %889 = vmatpush2.msra.mxu0 0.0
        %890 = vmatprep.subr.mxu0 0.0
        %891 = vmatpush2.msra.mxu0 0.0
        %892 = vmatprep.subr.mxu0 0.0
        %893 = vmatpush2.msra.mxu0 0.0
        %894 = vmatprep.subr.mxu0 0.0
        %895 = vmatpush2.msra.mxu0 0.0
        %896 = vmatprep.subr.mxu0 0.0
        %897 = vmatpush2.msra.mxu0 0.0
        %898 = vmatprep.subr.mxu0 0.0
        %899 = vmatpush2.msra.mxu0 0.0
        %900 = vmatprep.subr.mxu0 0.0
        %901 = vmatpush2.msra.mxu0 0.0
        %902 = vmatprep.subr.mxu0 0.0
        %903 = vmatpush2.msra.mxu0 0.0
        %904 = vmatprep.subr.mxu0 0.0
        %905 = vmatpush2.msra.mxu0 0.0
        %906 = vmatprep.subr.mxu0 0.0
        %907 = vmatpush2.msra.mxu0 0.0
        %908 = vmatprep.subr.mxu0 0.0
        %909 = vmatpush2.msra.mxu0 0.0
        %910 = vmatprep.subr.mxu0 0.0
        %911 = vmatpush2.msra.mxu0 0.0
        %912 = vmatprep.mubr.f32.mxu0 0.0
        %913 = vmatmul.mubr.f32.gmra.mxu0 %v843
        %v914 = vpop.f32.mrf.mxu0
        %v915 = vadd.f32 0.0, %v914
        %v916 = vpop.f32.mrf.mxu0
        %917 = vmatprep.mubr.f32.mxu0 0.0
        %918 = vmatmul.mubr.f32.gmra.mxu0 %v846
        %v919 = vpop.f32.mrf.mxu0
        %v920 = vadd.f32 0.0, %v919
        %v921 = vpop.f32.mrf.mxu0
        %922 = vdwg.mxu0
        %s923 = scalar_lea.vmem %s255, 112 [#allocation7]
        %924 = vst.msk [vmem:[%s923] sm:$0xff] %vm264, %v915
        %925 = vst.msk [vmem:[%s923 + $0x8] sm:$0xff] %vm264, %v920
        %s926 = sand.u32 %s126, 1
        %s927 = scalar_lea.sflag [#allocation4], %s926
        %s928 = sand.u32 %s126, 1
        %s929 = smul.addr %s928, 128
        %s930 = scalar_lea.vmem [#allocation7], %s929
        // Predicated region
        $region45: #{tpu_custom_call.1} parent=35 // pred_check
          %p931 = pneg %p136
        $region46: #{tpu_custom_call.1} parent=35 // pred_check_branch
          %933 = sbr.rel (%p931) target = $region48
        $region47: #{tpu_custom_call.1} parent=35 // pred_region
          %s935 = ssub.s32 2048, 2048
          %936 = vsyncadd %s927, %s935
          %s937 = smul.addr %s24, 16
          %s938 = smul.addr %s937, 128
          %s939 = scalar_lea.hbm %s4, %s938
          %s940 = sshll.u32 %s930, 4
          %s941 = int_to_ptr.vmem [resolvable:$true] %s940
          %946 = dma.vmem_to_hbm [thread:$0]  %s941, 2048, %s939, %s927, 128, 128, 8
        $region48: #{tpu_custom_call.1} parent=35 // pred_fallthru
          _
      $region36: #{tpu_custom_call.1} parent=5 // pred_fallthru
        _
      %p947 = scmp.le.s32.totalorder 2, %s19
      // Predicated region
      $region49: #{tpu_custom_call.1} parent=5 // pred_check
        %p948 = pneg %p947
      $region50: #{tpu_custom_call.1} parent=5 // pred_check_branch
        %950 = sbr.rel (%p948) target = $region52
      $region51: #{tpu_custom_call.1} parent=5 // pred_region
        %s951 = ssub.s32 %s19, 2
        // Predicated region
        $region53: #{tpu_custom_call.1} parent=51 // pred_check
          %p952 = pneg %p142
        $region54: #{tpu_custom_call.1} parent=51 // pred_check_branch
          %954 = sbr.rel (%p952) target = $region56
        $region55: #{tpu_custom_call.1} parent=51 // pred_region
          %s955 = sand.u32 %s127, 1
          %s956 = scalar_lea.sflag [#allocation4], %s955
          %s957 = sand.u32 %s127, 1
          %s958 = smul.addr %s957, 128
          %s959 = scalar_lea.vmem [#allocation7], %s958
          %960 = dma.done %s956, 2048
        $region56: #{tpu_custom_call.1} parent=51 // pred_fallthru
          _
      $region52: #{tpu_custom_call.1} parent=5 // pred_fallthru
        _
    $region6: #{tpu_custom_call.1} parent=1 // loop_footer
      %s23 = sadd.s32 1, %s19
    $region7: #{tpu_custom_call.1} parent=1 // loop_footer_branch
      %18 = sbr.rel target = $region3
    $region8: #{tpu_custom_call.1} parent=1 // loop_exit
      _
    %961 = vsyncpa [#allocation3], 1
    %s962 = scalar_lea.sflag [#allocation3], 1
    %963 = vsyncpa %s962, 1
    %964 = vsyncpa [#allocation6], 1
    %s965 = scalar_lea.sflag [#allocation6], 1
    %966 = vsyncpa %s965, 1
    %967 = vsyncpa [#allocation4], 1
    %s968 = scalar_lea.sflag [#allocation4], 1
    %969 = vsyncpa %s968, 1

</llo_original>
